<compile_context>
chip_gen: v5e
topology: v5e:2x2
jax: 0.10.0
libtpu: 0.0.40
codegen_flags: <defaults>
</compile_context>

<pallas_src>
import jax
import jax.numpy as jnp
from jax.experimental import pallas as pl
from jax.experimental.pallas import tpu as pltpu


def _ae_kernel(x_ref, w1_ref, b1_ref, w23_ref, b23_ref, w4_ref, b4_ref, o_ref):
    """Fused 3-matmul MLP forward for one batch tile, entirely in VMEM."""
    x = x_ref[...]

    # fc1 + ReLU
    h1 = jnp.dot(x, w1_ref[...], preferred_element_type=jnp.float32) + b1_ref[...]
    h1 = jnp.maximum(h1, 0.0)

    # fused fc2 . fc3 (no nonlinearity between them in the reference forward) + ReLU
    h3 = jnp.dot(h1.astype(w23_ref.dtype), w23_ref[...],
                 preferred_element_type=jnp.float32) + b23_ref[...]
    h3 = jnp.maximum(h3, 0.0)

    # fc4
    y = jnp.dot(h3.astype(w4_ref.dtype), w4_ref[...],
                preferred_element_type=jnp.float32) + b4_ref[...]

    o_ref[...] = y.astype(o_ref.dtype)


def ae_forward(x, params, *, block_b=256, compute_dtype=None):
    """Autoencoder forward.

    x       : (B, input_size), any float dtype.
    params  : dict with pre-transposed weights  w_k: (in, out), biases b_k: (1, out).
    block_b : batch tile size in *packed* rows (each packed row holds
              P = 128 // input_size samples when that divides evenly).
    compute_dtype : optional dtype (e.g. jnp.bfloat16) for x / weights on the MXU;
                    accumulation is always f32, output keeps x.dtype.
    """
    B, D = x.shape
    out_dtype = x.dtype
    cdt = jnp.dtype(compute_dtype) if compute_dtype is not None else jnp.dtype(x.dtype)
    f32 = jnp.float32

    # ---- algebraic fusion of fc2.fc3 (done once, in f32) -------------------
    w1 = params["w1"].astype(f32); b1 = params["b1"].astype(f32)
    w2 = params["w2"].astype(f32); b2 = params["b2"].astype(f32)
    w3 = params["w3"].astype(f32); b3 = params["b3"].astype(f32)
    w4 = params["w4"].astype(f32); b4 = params["b4"].astype(f32)
    w23 = w2 @ w3                       # (32, 32)
    b23 = b2 @ w3 + b3                  # (1, 32)

    # ---- lane-dense sample packing (Option A) ------------------------------
    if D < 128 and 128 % D == 0:
        P = 128 // D                    # samples per 128-lane row
    else:
        P = 1
    Dp = D * P

    def bd(w):                          # block-diagonal replication, exact
        return w if P == 1 else jnp.kron(jnp.eye(P, dtype=w.dtype), w)

    def tile_bias(b):
        return b if P == 1 else jnp.tile(b, (1, P))

    W1  = bd(w1).astype(cdt)            # (P*D,  P*32)
    W23 = bd(w23).astype(cdt)           # (P*32, P*32)
    W4  = bd(w4).astype(cdt)            # (P*32, P*D)
    B1  = tile_bias(b1)                 # (1, P*32)  f32 (added to f32 acc)
    B23 = tile_bias(b23)                # (1, P*32)
    B4  = tile_bias(b4)                 # (1, P*D)

    # ---- batch tiling / tail padding (no divisibility requirement) ---------
    rows = -(-B // P)                   # packed rows needed
    block_rows = min(block_b, rows)
    if block_rows < rows:               # multi-tile: second-to-last dim must be 8-aligned
        block_rows = ((block_rows + 7) // 8) * 8
    n_tiles = -(-rows // block_rows)
    rows_pad = n_tiles * block_rows
    B_pad = rows_pad * P

    xp = x.astype(cdt)
    if B_pad != B:
        xp = jnp.pad(xp, ((0, B_pad - B), (0, 0)))
    xp = xp.reshape(rows_pad, Dp)       # row-major pack: layout-preserving reshape

    # ---- cost hint for the XLA scheduler ------------------------------------
    flops = 2 * B * (D * 32 + 32 * 32 + 32 * D)
    bytes_accessed = (
        xp.size * xp.dtype.itemsize
        + rows_pad * Dp * jnp.dtype(out_dtype).itemsize
        + sum(int(a.size) * a.dtype.itemsize for a in (W1, B1, W23, B23, W4, B4))
    )

    def full_spec(arr):
        return pl.BlockSpec(arr.shape, lambda i: (0, 0))

    out_packed = pl.pallas_call(
        _ae_kernel,
        out_shape=jax.ShapeDtypeStruct((rows_pad, Dp), out_dtype),
        grid_spec=pltpu.PrefetchScalarGridSpec(
            num_scalar_prefetch=0,
            grid=(n_tiles,),
            in_specs=[
                pl.BlockSpec((block_rows, Dp), lambda i: (i, 0)),   # x (packed)
                full_spec(W1), full_spec(B1),
                full_spec(W23), full_spec(B23),
                full_spec(W4), full_spec(B4),
            ],
            out_specs=pl.BlockSpec((block_rows, Dp), lambda i: (i, 0)),
        ),
        compiler_params=pltpu.CompilerParams(
            dimension_semantics=("parallel",)),
        cost_estimate=pl.CostEstimate(
            flops=int(flops), transcendentals=0,
            bytes_accessed=int(bytes_accessed)),
    )(xp, W1, B1, W23, B23, W4, B4)

    out = out_packed.reshape(B_pad, D)
    if B_pad != B:
        out = out[:B]
    return out


def init_params(key, input_size, encoding_dim):
    """PyTorch nn.Linear-style init (uniform(-1/sqrt(fan_in), +)), pre-transposed."""
    def linear(key, fan_in, fan_out):
        kw, kb = jax.random.split(key)
        bound = 1.0 / float(fan_in) ** 0.5
        w = jax.random.uniform(kw, (fan_in, fan_out), jnp.float32, -bound, bound)
        b = jax.random.uniform(kb, (1, fan_out), jnp.float32, -bound, bound)
        return w, b

    k1, k2, k3, k4 = jax.random.split(key, 4)
    w1, b1 = linear(k1, input_size, 32)
    w2, b2 = linear(k2, 32, encoding_dim)
    w3, b3 = linear(k3, encoding_dim, 32)
    w4, b4 = linear(k4, 32, input_size)
    return {"w1": w1, "b1": b1, "w2": w2, "b2": b2,
            "w3": w3, "b3": b3, "w4": w4, "b4": b4}


def ae_forward_ref(x, p):
    """Pure-JAX reference of the (unfused) PyTorch forward."""
    h1 = jnp.maximum(x @ p["w1"] + p["b1"], 0.0)
    z = h1 @ p["w2"] + p["b2"]
    h3 = jnp.maximum(z @ p["w3"] + p["b3"], 0.0)
    return h3 @ p["w4"] + p["b4"]


if __name__ == "__main__":
    encoding_dim = 16
    input_size = 64
    batch = 8

    key = jax.random.PRNGKey(0)
    kx, kp = jax.random.split(key)
    x = jax.random.normal(kx, (batch, input_size), jnp.float32)
    params = init_params(kp, input_size, encoding_dim)

    ref = ae_forward_ref(x, params)

    # f32 path (fused fc2.fc3, packed lanes) — exact up to fp reassociation.
    out = jax.block_until_ready(ae_forward(x, params))
    assert out.shape == (batch, input_size)
    assert jnp.allclose(out, ref, atol=1e-4, rtol=1e-4), "f32 mismatch vs reference"

    # bf16 data movement, f32 accumulation (v6e/v7x fast path).
    out_bf16 = jax.block_until_ready(
        ae_forward(x, params, compute_dtype=jnp.bfloat16))
    assert jnp.allclose(out_bf16, ref, atol=5e-2, rtol=5e-2), "bf16 mismatch vs reference"

    # non-divisible batch: handled by zero-padding the tail tile.
    x_odd = jax.random.normal(kx, (batch + 3, input_size), jnp.float32)
    out_odd = jax.block_until_ready(ae_forward(x_odd, params))
    ref_odd = ae_forward_ref(x_odd, params)
    assert jnp.allclose(out_odd, ref_odd, atol=1e-4, rtol=1e-4), "odd-batch mismatch"

    print("KERNEL_OK")
</pallas_src>

<mosaic_0001>
module attributes {stable_mosaic.version = 11 : i64} {
  func.func @_ae_kernel(%arg0: i32, %arg1: memref<4x128xf32, #tpu.memory_space<vmem>>, %arg2: memref<128x64xf32, #tpu.memory_space<vmem>>, %arg3: memref<1x64xf32, #tpu.memory_space<vmem>>, %arg4: memref<64x64xf32, #tpu.memory_space<vmem>>, %arg5: memref<1x64xf32, #tpu.memory_space<vmem>>, %arg6: memref<64x128xf32, #tpu.memory_space<vmem>>, %arg7: memref<1x128xf32, #tpu.memory_space<vmem>>, %arg8: memref<4x128xf32, #tpu.memory_space<vmem>>) attributes {dimension_semantics = [#tpu.dimension_semantics<parallel>], iteration_bounds = array<i64: 1>, scalar_prefetch = 0 : i64, scratch_operands = 0 : i64, tpu.core_type = #tpu.core_type<tc>, window_params = [{transform_indices = @transform_0, window_bounds = array<i64: 4, 128>}, {pipeline_mode = #tpu.pipeline_mode<synchronous>, transform_indices = @transform_1, window_bounds = array<i64: 128, 64>}, {pipeline_mode = #tpu.pipeline_mode<synchronous>, transform_indices = @transform_2, window_bounds = array<i64: 1, 64>}, {pipeline_mode = #tpu.pipeline_mode<synchronous>, transform_indices = @transform_3, window_bounds = array<i64: 64, 64>}, {pipeline_mode = #tpu.pipeline_mode<synchronous>, transform_indices = @transform_4, window_bounds = array<i64: 1, 64>}, {pipeline_mode = #tpu.pipeline_mode<synchronous>, transform_indices = @transform_5, window_bounds = array<i64: 64, 128>}, {pipeline_mode = #tpu.pipeline_mode<synchronous>, transform_indices = @transform_6, window_bounds = array<i64: 1, 128>}, {transform_indices = @transform_7, window_bounds = array<i64: 4, 128>}]} {
    %c0 = arith.constant 0 : index
    %c0_0 = arith.constant 0 : index
    %0 = vector.load %arg1[%c0, %c0_0] : memref<4x128xf32, #tpu.memory_space<vmem>>, vector<4x128xf32>
    %c0_1 = arith.constant 0 : index
    %c0_2 = arith.constant 0 : index
    %1 = vector.load %arg2[%c0_1, %c0_2] : memref<128x64xf32, #tpu.memory_space<vmem>>, vector<128x64xf32>
    %cst = arith.constant dense<0.000000e+00> : vector<4x64xf32>
    %2 = tpu.matmul %0, %1, %cst {dimension_numbers = #tpu.dot_dimension_numbers<[1], [0], [0], [1], [0, 0, 1, 1], [], []>} : vector<4x128xf32>, vector<128x64xf32>, vector<4x64xf32> -> vector<4x64xf32>
    %c0_3 = arith.constant 0 : index
    %c0_4 = arith.constant 0 : index
    %3 = vector.load %arg3[%c0_3, %c0_4] : memref<1x64xf32, #tpu.memory_space<vmem>>, vector<1x64xf32>
    %4 = vector.broadcast %3 : vector<1x64xf32> to vector<4x64xf32>
    %5 = arith.addf %2, %4 : vector<4x64xf32>
    %cst_5 = arith.constant 0.000000e+00 : f32
    %6 = vector.broadcast %cst_5 : f32 to vector<4x64xf32>
    %7 = arith.maximumf %5, %6 : vector<4x64xf32>
    %c0_6 = arith.constant 0 : index
    %c0_7 = arith.constant 0 : index
    %8 = vector.load %arg4[%c0_6, %c0_7] : memref<64x64xf32, #tpu.memory_space<vmem>>, vector<64x64xf32>
    %cst_8 = arith.constant dense<0.000000e+00> : vector<4x64xf32>
    %9 = tpu.matmul %7, %8, %cst_8 {dimension_numbers = #tpu.dot_dimension_numbers<[1], [0], [0], [1], [0, 0, 1, 1], [], []>} : vector<4x64xf32>, vector<64x64xf32>, vector<4x64xf32> -> vector<4x64xf32>
    %c0_9 = arith.constant 0 : index
    %c0_10 = arith.constant 0 : index
    %10 = vector.load %arg5[%c0_9, %c0_10] : memref<1x64xf32, #tpu.memory_space<vmem>>, vector<1x64xf32>
    %11 = vector.broadcast %10 : vector<1x64xf32> to vector<4x64xf32>
    %12 = arith.addf %9, %11 : vector<4x64xf32>
    %cst_11 = arith.constant 0.000000e+00 : f32
    %13 = vector.broadcast %cst_11 : f32 to vector<4x64xf32>
    %14 = arith.maximumf %12, %13 : vector<4x64xf32>
    %c0_12 = arith.constant 0 : index
    %c0_13 = arith.constant 0 : index
    %15 = vector.load %arg6[%c0_12, %c0_13] : memref<64x128xf32, #tpu.memory_space<vmem>>, vector<64x128xf32>
    %cst_14 = arith.constant dense<0.000000e+00> : vector<4x128xf32>
    %16 = tpu.matmul %14, %15, %cst_14 {dimension_numbers = #tpu.dot_dimension_numbers<[1], [0], [0], [1], [0, 0, 1, 1], [], []>} : vector<4x64xf32>, vector<64x128xf32>, vector<4x128xf32> -> vector<4x128xf32>
    %c0_15 = arith.constant 0 : index
    %c0_16 = arith.constant 0 : index
    %17 = vector.load %arg7[%c0_15, %c0_16] : memref<1x128xf32, #tpu.memory_space<vmem>>, vector<1x128xf32>
    %18 = vector.broadcast %17 : vector<1x128xf32> to vector<4x128xf32>
    %19 = arith.addf %16, %18 : vector<4x128xf32>
    %c0_17 = arith.constant 0 : index
    %c0_18 = arith.constant 0 : index
    %20 = vector.load %arg8[%c0_17, %c0_18] : memref<4x128xf32, #tpu.memory_space<vmem>>, vector<4x128xf32>
    tpu.vector_store %arg8[%c0_17, %c0_18], %19 {strides = array<i32>} : memref<4x128xf32, #tpu.memory_space<vmem>>, vector<4x128xf32>,
    return
  }
  func.func @transform_0(%arg0: i32) -> (i32, i32) {
    %c0_i32 = arith.constant 0 : i32
    %c0_i32_0 = arith.constant 0 : i32
    return %arg0, %c0_i32 : i32, i32
  }
  func.func @transform_1(%arg0: i32) -> (i32, i32) {
    %c0_i32 = arith.constant 0 : i32
    %c0_i32_0 = arith.constant 0 : i32
    %c0_i32_1 = arith.constant 0 : i32
    return %c0_i32, %c0_i32_0 : i32, i32
  }
  func.func @transform_2(%arg0: i32) -> (i32, i32) {
    %c0_i32 = arith.constant 0 : i32
    %c0_i32_0 = arith.constant 0 : i32
    %c0_i32_1 = arith.constant 0 : i32
    return %c0_i32, %c0_i32_0 : i32, i32
  }
  func.func @transform_3(%arg0: i32) -> (i32, i32) {
    %c0_i32 = arith.constant 0 : i32
    %c0_i32_0 = arith.constant 0 : i32
    %c0_i32_1 = arith.constant 0 : i32
    return %c0_i32, %c0_i32_0 : i32, i32
  }
  func.func @transform_4(%arg0: i32) -> (i32, i32) {
    %c0_i32 = arith.constant 0 : i32
    %c0_i32_0 = arith.constant 0 : i32
    %c0_i32_1 = arith.constant 0 : i32
    return %c0_i32, %c0_i32_0 : i32, i32
  }
  func.func @transform_5(%arg0: i32) -> (i32, i32) {
    %c0_i32 = arith.constant 0 : i32
    %c0_i32_0 = arith.constant 0 : i32
    %c0_i32_1 = arith.constant 0 : i32
    return %c0_i32, %c0_i32_0 : i32, i32
  }
  func.func @transform_6(%arg0: i32) -> (i32, i32) {
    %c0_i32 = arith.constant 0 : i32
    %c0_i32_0 = arith.constant 0 : i32
    %c0_i32_1 = arith.constant 0 : i32
    return %c0_i32, %c0_i32_0 : i32, i32
  }
  func.func @transform_7(%arg0: i32) -> (i32, i32) {
    %c0_i32 = arith.constant 0 : i32
    %c0_i32_0 = arith.constant 0 : i32
    return %arg0, %c0_i32 : i32, i32
  }
}

</mosaic_0001>

<llo_original>
// kernel: tpu_custom_call.1
$region0: #{tpu_custom_call.1}
  #allocation0 [shape = 'u32[]', space=smem, size = 0x4, offset = 0x4, fixed_abs, tag = 'smem constant byte address 0x4 - core index']
  #allocation1 [shape = 'u32[72,128]{1,0:T(1,128)}', space=vmem, size = 0x9000, scoped, tag = 'internal scratch']
  %s0 = inlined_call_operand.vmem [shape: f32[4,128], index: 0, kind: input, shape index: {}]
  %s1 = inlined_call_operand.vmem [shape: f32[128,64], index: 1, kind: input, shape index: {}]
  %s2 = inlined_call_operand.vmem [shape: f32[1,64], index: 2, kind: input, shape index: {}]
  %s3 = inlined_call_operand.vmem [shape: f32[64,64], index: 3, kind: input, shape index: {}]
  %s4 = inlined_call_operand.vmem [shape: f32[1,64], index: 4, kind: input, shape index: {}]
  %s5 = inlined_call_operand.vmem [shape: f32[64,128], index: 5, kind: input, shape index: {}]
  %s6 = inlined_call_operand.vmem [shape: f32[1,128], index: 6, kind: input, shape index: {}]
  %s7 = inlined_call_operand.hbm [shape: f32[4,128], index: 7, kind: output, shape index: {}]
  %s8 = sld [smem:[#allocation0]]
  $region38: #{tpu_custom_call.1} parent=0
    _
  %s10 = ssub.s32 1, %s8
  %s11 = scalar_select 0, %s10, %s8
  $region1: #{tpu_custom_call.1} parent=0
    #allocation2 [shape = 'u8[2048]{0}', space=vmem, size = 0x800, scoped, tag = 'output window, operand 0, single buffered']
    #allocation3 [shape = 's32[1]{0}', space=sflag, size = 0x4, scoped, tag = 'scoped memory for tpu_custom_call.1']
    %12 = vsyncpa [#allocation3], 0
    // Predicated region
    $region2: #{tpu_custom_call.1} parent=1 // pred_check
      _
    $region3: #{tpu_custom_call.1} parent=1 // pred_check_branch
      %14 = sbr.rel (0) target = $region5
    $region4: #{tpu_custom_call.1} parent=1 // pred_region
      _
    $region5: #{tpu_custom_call.1} parent=1 // pred_fallthru
      _
    // Predicated region
    $region6: #{tpu_custom_call.1} parent=1 // pred_check
      _
    $region7: #{tpu_custom_call.1} parent=1 // pred_check_branch
      %16 = sbr.rel (0) target = $region9
    $region8: #{tpu_custom_call.1} parent=1 // pred_region
      _
    $region9: #{tpu_custom_call.1} parent=1 // pred_fallthru
      _
    // Predicated region
    $region10: #{tpu_custom_call.1} parent=1 // pred_check
      _
    $region11: #{tpu_custom_call.1} parent=1 // pred_check_branch
      %18 = sbr.rel (0) target = $region13
    $region12: #{tpu_custom_call.1} parent=1 // pred_region
      _
    $region13: #{tpu_custom_call.1} parent=1 // pred_fallthru
      _
    // Predicated region
    $region14: #{tpu_custom_call.1} parent=1 // pred_check
      _
    $region15: #{tpu_custom_call.1} parent=1 // pred_check_branch
      %20 = sbr.rel (0) target = $region17
    $region16: #{tpu_custom_call.1} parent=1 // pred_region
      _
    $region17: #{tpu_custom_call.1} parent=1 // pred_fallthru
      _
    // Predicated region
    $region18: #{tpu_custom_call.1} parent=1 // pred_check
      _
    $region19: #{tpu_custom_call.1} parent=1 // pred_check_branch
      %22 = sbr.rel (0) target = $region21
    $region20: #{tpu_custom_call.1} parent=1 // pred_region
      _
    $region21: #{tpu_custom_call.1} parent=1 // pred_fallthru
      _
    // Predicated region
    $region22: #{tpu_custom_call.1} parent=1 // pred_check
      _
    $region23: #{tpu_custom_call.1} parent=1 // pred_check_branch
      %24 = sbr.rel (0) target = $region25
    $region24: #{tpu_custom_call.1} parent=1 // pred_region
      _
    $region25: #{tpu_custom_call.1} parent=1 // pred_fallthru
      _
    // Predicated region
    $region26: #{tpu_custom_call.1} parent=1 // pred_check
      _
    $region27: #{tpu_custom_call.1} parent=1 // pred_check_branch
      %26 = sbr.rel (0) target = $region29
    $region28: #{tpu_custom_call.1} parent=1 // pred_region
      _
    $region29: #{tpu_custom_call.1} parent=1 // pred_fallthru
      _
    %v27 = vld [vmem:[%s0] sm:$0xf]
    %v28 = vld [vmem:[%s1] sm:$0xff]
    %v29 = vld [vmem:[%s1 + $0x8] sm:$0xff]
    %v30 = vld [vmem:[%s1 + $0x10] sm:$0xff]
    %v31 = vld [vmem:[%s1 + $0x18] sm:$0xff]
    %v32 = vld [vmem:[%s1 + $0x20] sm:$0xff]
    %v33 = vld [vmem:[%s1 + $0x28] sm:$0xff]
    %v34 = vld [vmem:[%s1 + $0x30] sm:$0xff]
    %v35 = vld [vmem:[%s1 + $0x38] sm:$0xff]
    %v36 = vld [vmem:[%s1 + $0x40] sm:$0xff]
    %v37 = vld [vmem:[%s1 + $0x48] sm:$0xff]
    %v38 = vld [vmem:[%s1 + $0x50] sm:$0xff]
    %v39 = vld [vmem:[%s1 + $0x58] sm:$0xff]
    %v40 = vld [vmem:[%s1 + $0x60] sm:$0xff]
    %v41 = vld [vmem:[%s1 + $0x68] sm:$0xff]
    %v42 = vld [vmem:[%s1 + $0x70] sm:$0xff]
    %v43 = vld [vmem:[%s1 + $0x78] sm:$0xff]
    %v44 = vld [vmem:[%s2] sm:$0x1]
    %v46 = vperm.slane %v44, 0
    %48 = vmatpush.msra.mxu0 %v43
    %49 = vmatpush.msra.mxu0 %v42
    %50 = vmatpush.msra.mxu0 %v41
    %51 = vmatpush.msra.mxu0 %v40
    %52 = vmatpush.msra.mxu0 %v39
    %53 = vmatpush.msra.mxu0 %v38
    %54 = vmatpush.msra.mxu0 %v37
    %55 = vmatpush.msra.mxu0 %v36
    %56 = vmatpush.msra.mxu0 %v35
    %57 = vmatpush.msra.mxu0 %v34
    %58 = vmatpush.msra.mxu0 %v33
    %59 = vmatpush.msra.mxu0 %v32
    %60 = vmatpush.msra.mxu0 %v31
    %61 = vmatpush.msra.mxu0 %v30
    %62 = vmatpush.msra.mxu0 %v29
    %63 = vmatpush.msra.mxu0 %v28
    %64 = vmatmul.f32.gmra.mxu0 %v27
    %v65 = vpop.f32.mrf.mxu0
    %v66 = vadd.f32 %v46, %v65
    %67 = vdwg.mxu0
    %v68 = vmax.f32 %v66, 0.0
    %v69 = vld [vmem:[%s3] sm:$0xff]
    %v70 = vld [vmem:[%s3 + $0x8] sm:$0xff]
    %v71 = vld [vmem:[%s3 + $0x10] sm:$0xff]
    %v72 = vld [vmem:[%s3 + $0x18] sm:$0xff]
    %v73 = vld [vmem:[%s3 + $0x20] sm:$0xff]
    %v74 = vld [vmem:[%s3 + $0x28] sm:$0xff]
    %v75 = vld [vmem:[%s3 + $0x30] sm:$0xff]
    %v76 = vld [vmem:[%s3 + $0x38] sm:$0xff]
    %v77 = vld [vmem:[%s4] sm:$0x1]
    %v79 = vperm.slane %v77, 0
    %vm81 = vcmask 523264
    %v83 = vsel %vm81, %v68, 0
    %85 = vmatpush.msra.mxu0 0.0
    %86 = vmatpush.msra.mxu0 0.0
    %87 = vmatpush.msra.mxu0 0.0
    %88 = vmatpush.msra.mxu0 0.0
    %89 = vmatpush.msra.mxu0 0.0
    %90 = vmatpush.msra.mxu0 0.0
    %91 = vmatpush.msra.mxu0 0.0
    %92 = vmatpush.msra.mxu0 0.0
    %93 = vmatpush.msra.mxu0 %v76
    %94 = vmatpush.msra.mxu0 %v75
    %95 = vmatpush.msra.mxu0 %v74
    %96 = vmatpush.msra.mxu0 %v73
    %97 = vmatpush.msra.mxu0 %v72
    %98 = vmatpush.msra.mxu0 %v71
    %99 = vmatpush.msra.mxu0 %v70
    %100 = vmatpush.msra.mxu0 %v69
    %101 = vmatmul.f32.gmra.mxu0 %v83
    %v102 = vpop.f32.mrf.mxu0
    %v103 = vadd.f32 %v79, %v102
    %104 = vdwg.mxu0
    %v105 = vmax.f32 %v103, 0.0
    %v106 = vld [vmem:[%s5] sm:$0xff]
    %v107 = vld [vmem:[%s5 + $0x8] sm:$0xff]
    %v108 = vld [vmem:[%s5 + $0x10] sm:$0xff]
    %v109 = vld [vmem:[%s5 + $0x18] sm:$0xff]
    %v110 = vld [vmem:[%s5 + $0x20] sm:$0xff]
    %v111 = vld [vmem:[%s5 + $0x28] sm:$0xff]
    %v112 = vld [vmem:[%s5 + $0x30] sm:$0xff]
    %v113 = vld [vmem:[%s5 + $0x38] sm:$0xff]
    %v114 = vld [vmem:[%s6] sm:$0x1]
    %v116 = vperm.slane %v114, 0
    %v119 = vsel %vm81, %v105, 0
    %121 = vmatpush.msra.mxu0 0.0
    %122 = vmatpush.msra.mxu0 0.0
    %123 = vmatpush.msra.mxu0 0.0
    %124 = vmatpush.msra.mxu0 0.0
    %125 = vmatpush.msra.mxu0 0.0
    %126 = vmatpush.msra.mxu0 0.0
    %127 = vmatpush.msra.mxu0 0.0
    %128 = vmatpush.msra.mxu0 0.0
    %129 = vmatpush.msra.mxu0 %v113
    %130 = vmatpush.msra.mxu0 %v112
    %131 = vmatpush.msra.mxu0 %v111
    %132 = vmatpush.msra.mxu0 %v110
    %133 = vmatpush.msra.mxu0 %v109
    %134 = vmatpush.msra.mxu0 %v108
    %135 = vmatpush.msra.mxu0 %v107
    %136 = vmatpush.msra.mxu0 %v106
    %137 = vmatmul.f32.gmra.mxu0 %v119
    %v138 = vpop.f32.mrf.mxu0
    %v139 = vadd.f32 %v116, %v138
    %140 = vdwg.mxu0
    %141 = vst [vmem:[#allocation2] sm:$0xf] %v139
    // Predicated region
    $region30: #{tpu_custom_call.1} parent=1 // pred_check
      _
    $region31: #{tpu_custom_call.1} parent=1 // pred_check_branch
      %143 = sbr.rel (0) target = $region33
    $region32: #{tpu_custom_call.1} parent=1 // pred_region
      %145 = vsyncadd [#allocation3], 0
      %s147 = sshll.u32 [#allocation2], 4
      %s148 = int_to_ptr.vmem [resolvable:$true] %s147
      %s149 = sshll.u32 %s7, 4
      %s150 = int_to_ptr.hbm [resolvable:$true] %s149
      %152 = dma.vmem_to_hbm [thread:$0]  %s148, 64, %s150, [#allocation3]
    $region33: #{tpu_custom_call.1} parent=1 // pred_fallthru
      _
    // Predicated region
    $region34: #{tpu_custom_call.1} parent=1 // pred_check
      _
    $region35: #{tpu_custom_call.1} parent=1 // pred_check_branch
      %154 = sbr.rel (0) target = $region37
    $region36: #{tpu_custom_call.1} parent=1 // pred_region
      %156 = dma.done [#allocation3], 64
    $region37: #{tpu_custom_call.1} parent=1 // pred_fallthru
      _
    %157 = vsyncpa [#allocation3], 1

</llo_original>
